<compile_context>
chip_gen: v5e
topology: v5e:2x2
jax: 0.10.0
libtpu: 0.0.40
codegen_flags: <defaults>
</compile_context>

<pallas_src>
import functools

import jax
import jax.numpy as jnp
from jax.experimental import pallas as pl
from jax.experimental.pallas import tpu as pltpu


def _round_up(x, m):
    return (x + m - 1) // m * m


def _pad2d(x, rows, cols):
    pr, pc = rows - x.shape[0], cols - x.shape[1]
    if pr or pc:
        x = jnp.pad(x, ((0, pr), (0, pc)))
    return x


def gcn_sim_kernel(sim_ref, h_ref, bias_ref, out_ref, *, alpha, tn, h_resident):
    """One (i, k) grid step: out[i] += sim[i, k] @ h[k]; bias + PReLU on the last k."""
    k = pl.program_id(1)

    @pl.when(k == 0)
    def _init():
        out_ref[...] = jnp.zeros_like(out_ref)

    if h_resident:
        # Whole (padded) h lives in VMEM; take this step's reduction slice.
        start = pl.multiple_of(k * tn, tn)
        h = h_ref[pl.ds(start, tn), :]
    else:
        # h streamed as (tn, 128) reduction slices via the BlockSpec.
        h = h_ref[...]

    # Graph aggregation on the MXU, accumulated in f32 directly in the resident output.
    out_ref[...] += jnp.dot(sim_ref[...], h, preferred_element_type=jnp.float32)

    @pl.when(k == pl.num_programs(1) - 1)
    def _finalize():
        out = out_ref[...] + bias_ref[...]
        # PReLU with a single shared slope (trace-time constant; pass via SMEM scalar
        # instead if alpha changes between calls to avoid retraces).
        out_ref[...] = jnp.where(out > 0, out, alpha * out)


def gcn_sim_forward(emb, sim, w_fc, w_lin, b_lin, bias, prelu_alpha,
                    *, tm=512, tn=2048, compute_dtype=jnp.bfloat16,
                    h_resident=None, h_resident_budget_bytes=4 << 20):
    """emb: [N, C_in], sim: [M, N], w_fc: [C_out, C_in], w_lin: [128, C_in(=C_out)]."""
    emb = jnp.asarray(emb, jnp.float32)
    sim = jnp.asarray(sim, jnp.float32)
    M, N = sim.shape
    assert emb.shape[0] == N, "sim columns must match emb rows"
    H = w_lin.shape[0]  # 128
    alpha = float(prelu_alpha)

    # ---- Hoisted node-feature transform (once, f32, plain XLA) ---------------------------
    # emb @ W_fc^T @ W_lin^T + b_lin == emb @ (W_lin @ W_fc)^T + b_lin
    w_comb = (jnp.asarray(w_lin, jnp.float32) @ jnp.asarray(w_fc, jnp.float32)).T  # [C_in,H]
    h = emb @ w_comb + jnp.asarray(b_lin, jnp.float32).reshape(1, H)               # [N, H]
    bvec = jnp.asarray(bias, jnp.float32).reshape(1, H)

    # ---- Tiling ---------------------------------------------------------------------------
    # tm multiple of 16 (bf16 sublane packing), tn multiple of 128 (lanes); clamp so tiny
    # problems stay single-tile.
    tm = min(_round_up(tm, 16), _round_up(M, 16))
    tn = min(_round_up(tn, 128), _round_up(N, 128))
    m_pad, n_pad = _round_up(M, tm), _round_up(N, tn)
    grid_m, grid_k = m_pad // tm, n_pad // tn

    # Zero-pad ragged edges.  Padded sim columns are zero and padded h rows are zero, so
    # they contribute nothing; padded output rows are sliced off at the end.
    sim_p = _pad2d(sim, m_pad, n_pad).astype(compute_dtype)
    h_p = _pad2d(h, n_pad, H).astype(compute_dtype)

    # Keep h fully VMEM-resident when it fits the budget (eliminates the grid_m x re-stream
    # of the k-sliced operand; sim becomes the only HBM stream).
    if h_resident is None:
        h_resident = (n_pad * H * h_p.dtype.itemsize) <= h_resident_budget_bytes

    if h_resident:
        h_spec = pl.BlockSpec((n_pad, H), lambda i, k: (0, 0))
        h_bytes = n_pad * H * h_p.dtype.itemsize
    else:
        h_spec = pl.BlockSpec((tn, H), lambda i, k: (k, 0))
        h_bytes = grid_m * n_pad * H * h_p.dtype.itemsize

    itemsize = sim_p.dtype.itemsize
    cost = pl.CostEstimate(
        flops=int(2 * m_pad * n_pad * H),
        transcendentals=0,
        bytes_accessed=int(m_pad * n_pad * itemsize   # sim streamed once (dominant)
                           + h_bytes                  # h resident or re-streamed per M tile
                           + m_pad * H * 4),          # f32 output
    )

    kernel = functools.partial(gcn_sim_kernel, alpha=alpha, tn=tn, h_resident=h_resident)

    out_p = pl.pallas_call(
        kernel,
        out_shape=jax.ShapeDtypeStruct((m_pad, H), jnp.float32),
        grid=(grid_m, grid_k),
        in_specs=[
            pl.BlockSpec((tm, tn), lambda i, k: (i, k)),   # sim tile (dominant HBM stream)
            h_spec,                                        # h: resident or (tn, H) slices
            pl.BlockSpec((1, H), lambda i, k: (0, 0)),     # bias row (tiny, resident)
        ],
        out_specs=pl.BlockSpec((tm, H), lambda i, k: (i, 0)),  # f32 accumulator output
        compiler_params=pltpu.CompilerParams(
            dimension_semantics=("parallel", "arbitrary")),
        cost_estimate=cost,
    )(sim_p, h_p, bvec)

    return out_p[:M]


def xavier_normal(key, shape, gain):
    fan_out, fan_in = shape  # nn.Linear weight is [out_features, in_features]
    std = gain * (2.0 / (fan_in + fan_out)) ** 0.5
    return std * jax.random.normal(key, shape, dtype=jnp.float32)


if __name__ == "__main__":
    # Small shapes consistent with the module (lin consumes fc's output, so out_channels
    # must equal in_channels).  N chosen so the test exercises a real (3 x 2) grid with
    # ragged-edge padding and the resident-accumulator pattern.
    N = 160          # number of nodes (rows of emb / both dims of sim)
    IN_C = 32        # in_channels
    OUT_C = 32       # out_channels (== IN_C, required by the PyTorch forward)
    HID = 128        # lin output / bias size

    key = jax.random.PRNGKey(0)
    k_emb, k_sim, k_fc, k_lin = jax.random.split(key, 4)

    emb = jax.random.normal(k_emb, (N, IN_C), dtype=jnp.float32)
    sim = jax.random.normal(k_sim, (N, N), dtype=jnp.float32)

    # Deterministic parameter init mirroring __init__ / weights_init:
    w_fc = xavier_normal(k_fc, (OUT_C, IN_C), gain=1.414)    # fc.weight
    w_lin = xavier_normal(k_lin, (HID, OUT_C), gain=1.414)   # lin.weight
    b_lin = jnp.zeros((HID,), jnp.float32)                   # lin.bias.fill_(0.0)
    bias = jnp.zeros((HID,), jnp.float32)                    # self.bias.fill_(0.0)
    prelu_alpha = 0.25                                       # nn.PReLU() default

    # References.
    # (1) Matched-precision reference (same hoisted-h bf16 casts, f32 accumulation).
    w_comb = (w_lin @ w_fc).T
    h_f32 = emb @ w_comb + b_lin
    ref_m = jnp.dot(sim.astype(jnp.bfloat16), h_f32.astype(jnp.bfloat16),
                    preferred_element_type=jnp.float32) + bias
    ref_m = jnp.where(ref_m > 0, ref_m, prelu_alpha * ref_m)
    # (2) Full-f32 reference (original module semantics).
    ref = emb @ w_fc.T
    ref = ref @ w_lin.T + b_lin
    ref = sim @ ref + bias
    ref = jnp.where(ref > 0, ref, prelu_alpha * ref)

    # Small tiles so the toy problem actually runs a multi-tile grid; realistic graphs
    # should use the defaults (tm=512, tn=2048).  Exercise both the VMEM-resident-h path
    # and the streamed-h path.
    for resident in (True, False):
        out = gcn_sim_forward(emb, sim, w_fc, w_lin, b_lin, bias, prelu_alpha,
                              tm=64, tn=128, h_resident=resident)
        out = jax.block_until_ready(out)
        assert out.shape == (N, HID)
        assert jnp.allclose(out, ref_m, atol=5e-2, rtol=1e-2), f"resident={resident}"
        rel_err = jnp.max(jnp.abs(out - ref)) / jnp.max(jnp.abs(ref))
        assert rel_err < 3e-2, f"resident={resident} rel_err={rel_err}"

    print("KERNEL_OK")
</pallas_src>

<mosaic_0001>
module attributes {stable_mosaic.version = 11 : i64} {
  func.func @gcn_sim_kernel(%arg0: i32, %arg1: i32, %arg2: memref<64x128xbf16, #tpu.memory_space<vmem>>, %arg3: memref<256x128xbf16, #tpu.memory_space<vmem>>, %arg4: memref<1x128xf32, #tpu.memory_space<vmem>>, %arg5: memref<64x128xf32, #tpu.memory_space<vmem>>) attributes {dimension_semantics = [#tpu.dimension_semantics<parallel>, #tpu.dimension_semantics<arbitrary>], iteration_bounds = array<i64: 3, 2>, scalar_prefetch = 0 : i64, scratch_operands = 0 : i64, tpu.core_type = #tpu.core_type<tc>, window_params = [{transform_indices = @transform_0, window_bounds = array<i64: 64, 128>}, {pipeline_mode = #tpu.pipeline_mode<synchronous>, transform_indices = @transform_1, window_bounds = array<i64: 256, 128>}, {pipeline_mode = #tpu.pipeline_mode<synchronous>, transform_indices = @transform_2, window_bounds = array<i64: 1, 128>}, {transform_indices = @transform_3, window_bounds = array<i64: 64, 128>}]} {
    %c0_i32 = arith.constant 0 : i32
    %0 = arith.cmpi eq, %arg1, %c0_i32 : i32
    %1 = arith.extui %0 : i1 to i32
    %c0_i32_0 = arith.constant 0 : i32
    %2 = arith.cmpi ne, %1, %c0_i32_0 : i32
    scf.if %2 {
      %cst_8 = arith.constant 0.000000e+00 : f32
      %15 = vector.broadcast %cst_8 : f32 to vector<64x128xf32>
      %c0_9 = arith.constant 0 : index
      %c0_10 = arith.constant 0 : index
      %16 = vector.load %arg5[%c0_9, %c0_10] : memref<64x128xf32, #tpu.memory_space<vmem>>, vector<64x128xf32>
      tpu.vector_store %arg5[%c0_9, %c0_10], %15 {strides = array<i32>} : memref<64x128xf32, #tpu.memory_space<vmem>>, vector<64x128xf32>,
    } else {
    }
    %c128_i32 = arith.constant 128 : i32
    %3 = arith.muli %arg1, %c128_i32 : i32
    %4 = tpu.assume_multiple %3, 128 : i32
    %5 = arith.index_cast %4 : i32 to index
    %c0 = arith.constant 0 : index
    %6 = vector.load %arg3[%5, %c0] : memref<256x128xbf16, #tpu.memory_space<vmem>>, vector<128x128xbf16>
    %c0_1 = arith.constant 0 : index
    %c0_2 = arith.constant 0 : index
    %7 = vector.load %arg5[%c0_1, %c0_2] : memref<64x128xf32, #tpu.memory_space<vmem>>, vector<64x128xf32>
    %c0_3 = arith.constant 0 : index
    %c0_4 = arith.constant 0 : index
    %8 = vector.load %arg2[%c0_3, %c0_4] : memref<64x128xbf16, #tpu.memory_space<vmem>>, vector<64x128xbf16>
    %cst = arith.constant dense<0.000000e+00> : vector<64x128xf32>
    %9 = tpu.matmul %8, %6, %cst {dimension_numbers = #tpu.dot_dimension_numbers<[1], [0], [0], [1], [0, 0, 1, 1], [], []>} : vector<64x128xbf16>, vector<128x128xbf16>, vector<64x128xf32> -> vector<64x128xf32>
    %10 = arith.addf %7, %9 : vector<64x128xf32>
    %c0_5 = arith.constant 0 : index
    %c0_6 = arith.constant 0 : index
    %11 = vector.load %arg5[%c0_5, %c0_6] : memref<64x128xf32, #tpu.memory_space<vmem>>, vector<64x128xf32>
    tpu.vector_store %arg5[%c0_5, %c0_6], %10 {strides = array<i32>} : memref<64x128xf32, #tpu.memory_space<vmem>>, vector<64x128xf32>,
    %c1_i32 = arith.constant 1 : i32
    %12 = arith.cmpi eq, %arg1, %c1_i32 : i32
    %13 = arith.extui %12 : i1 to i32
    %c0_i32_7 = arith.constant 0 : i32
    %14 = arith.cmpi ne, %13, %c0_i32_7 : i32
    scf.if %14 {
      %c0_8 = arith.constant 0 : index
      %c0_9 = arith.constant 0 : index
      %15 = vector.load %arg5[%c0_8, %c0_9] : memref<64x128xf32, #tpu.memory_space<vmem>>, vector<64x128xf32>
      %c0_10 = arith.constant 0 : index
      %c0_11 = arith.constant 0 : index
      %16 = vector.load %arg4[%c0_10, %c0_11] : memref<1x128xf32, #tpu.memory_space<vmem>>, vector<1x128xf32>
      %17 = vector.broadcast %16 : vector<1x128xf32> to vector<64x128xf32>
      %18 = arith.addf %15, %17 : vector<64x128xf32>
      %cst_12 = arith.constant 0.000000e+00 : f32
      %19 = vector.broadcast %cst_12 : f32 to vector<64x128xf32>
      %20 = arith.cmpf ogt, %18, %19 : vector<64x128xf32>
      %cst_13 = arith.constant 2.500000e-01 : f32
      %21 = vector.broadcast %cst_13 : f32 to vector<64x128xf32>
      %22 = arith.mulf %21, %18 : vector<64x128xf32>
      %23 = arith.select %20, %18, %22 : vector<64x128xi1>, vector<64x128xf32>
      %c0_14 = arith.constant 0 : index
      %c0_15 = arith.constant 0 : index
      %24 = vector.load %arg5[%c0_14, %c0_15] : memref<64x128xf32, #tpu.memory_space<vmem>>, vector<64x128xf32>
      tpu.vector_store %arg5[%c0_14, %c0_15], %23 {strides = array<i32>} : memref<64x128xf32, #tpu.memory_space<vmem>>, vector<64x128xf32>,
    } else {
    }
    return
  }
  func.func @transform_0(%arg0: i32, %arg1: i32) -> (i32, i32) {
    %c0_i32 = arith.constant 0 : i32
    return %arg0, %arg1 : i32, i32
  }
  func.func @transform_1(%arg0: i32, %arg1: i32) -> (i32, i32) {
    %c0_i32 = arith.constant 0 : i32
    %c0_i32_0 = arith.constant 0 : i32
    %c0_i32_1 = arith.constant 0 : i32
    return %c0_i32, %c0_i32_0 : i32, i32
  }
  func.func @transform_2(%arg0: i32, %arg1: i32) -> (i32, i32) {
    %c0_i32 = arith.constant 0 : i32
    %c0_i32_0 = arith.constant 0 : i32
    %c0_i32_1 = arith.constant 0 : i32
    return %c0_i32, %c0_i32_0 : i32, i32
  }
  func.func @transform_3(%arg0: i32, %arg1: i32) -> (i32, i32) {
    %c0_i32 = arith.constant 0 : i32
    %c0_i32_0 = arith.constant 0 : i32
    return %arg0, %c0_i32 : i32, i32
  }
}

</mosaic_0001>

<llo_original>
// kernel: tpu_custom_call.1
$region0: #{tpu_custom_call.1}
  #allocation0 [shape = 'u32[]', space=smem, size = 0x4, offset = 0x4, fixed_abs, tag = 'smem constant byte address 0x4 - core index']
  #allocation1 [shape = 'u32[72,128]{1,0:T(1,128)}', space=vmem, size = 0x9000, scoped, tag = 'internal scratch']
  %s0 = inlined_call_operand.hbm [shape: bf16[192,256], index: 0, kind: input, shape index: {}]
  %s1 = inlined_call_operand.hbm [shape: bf16[256,128], index: 1, kind: input, shape index: {}]
  %s2 = inlined_call_operand.vmem [shape: f32[1,128], index: 2, kind: input, shape index: {}]
  %s3 = inlined_call_operand.hbm [shape: f32[192,128], index: 3, kind: output, shape index: {}]
  %s4 = sld [smem:[#allocation0]]
  $region61: #{tpu_custom_call.1} parent=0
    _
  %s6 = ssub.s32 1, %s4
  %s7 = scalar_select 0, %s6, %s4
  $region1: #{tpu_custom_call.1} parent=0
    #allocation2 [shape = 'u8[32768]{0}', space=vmem, size = 0x8000, scoped, tag = 'input window, operand 0']
    #allocation3 [shape = 's32[2]{0}', space=sflag, size = 0x8, scoped, tag = 'scoped memory for tpu_custom_call.1']
    #allocation4 [shape = 's32[2]{0}', space=sflag, size = 0x8, scoped, tag = 'scoped memory for tpu_custom_call.1']
    #allocation5 [shape = 'u8[65536]{0}', space=vmem, size = 0x10000, scoped, tag = 'input window, operand 1, single buffered']
    #allocation6 [shape = 's32[1]{0}', space=sflag, size = 0x4, scoped, tag = 'scoped memory for tpu_custom_call.1']
    #allocation7 [shape = 'u8[65536]{0}', space=vmem, size = 0x10000, scoped, tag = 'output window, operand 0']
    %8 = vsyncpa [#allocation3], 0
    %s9 = scalar_lea.sflag [#allocation3], 1
    %10 = vsyncpa %s9, 0
    %11 = vsyncpa [#allocation6], 0
    %12 = vsyncpa [#allocation4], 0
    %s13 = scalar_lea.sflag [#allocation4], 1
    %14 = vsyncpa %s13, 0
    loop: start=0, step=1, limit=8
    $region2: #{tpu_custom_call.1} parent=1 // loop_pre_header
      _
    $region3: #{tpu_custom_call.1} parent=1 // loop_header
      %s16 = sphi 0, %s20
      %p17 = scmp.ge.s32.totalorder %s16, 8
      %s23 = sphi 0, %s35
      %s24 = sphi 0, %s31
      %s25 = sphi 0, %s23
      %s26 = sphi 0, %s24
      %s27 = sphi 0, %s25
      %s28 = sphi 0, %s26
      %s40 = sphi 0, %s42
      %s43 = sphi 0, %s40
      %s44 = sphi 0, %s43
      %s60 = sphi 0, %s44
      %s64 = sphi 0, %s64
      %s66 = sphi 0, %s64
      %s67 = sphi 0, %s66
      %s81 = sphi 0, %s67
      %s85 = sphi 0, %s85
      %s87 = sphi 0, %s85
      %s88 = sphi 0, %s87
      %s102 = sphi 0, %s88
      %s108 = sphi 0, %s110
      %s111 = sphi 0, %s108
      %s112 = sphi 0, %s111
      %s128 = sphi 0, %s112
    $region4: #{tpu_custom_call.1} parent=1 // loop_header_branch
      %19 = sbr.rel (%p17) target = $region8
    $region5: #{tpu_custom_call.1} parent=1 // loop_body
      %s21 = ssub.s32 %s16, 1
      %s22 = ssub.s32 %s16, 2
      %s29 = sadd.s32 1, %s24
      %p30 = scmp.ge.s32.totalorder %s29, 2
      %s31 = scalar_select %p30, 0, %s29
      %s32 = sadd.s32 1, %s23
      %s33 = scalar_select %p30, %s32, %s23
      %p34 = scmp.ge.s32.totalorder %s33, 3
      %s35 = scalar_select %p34, 0, %s33
      %s36 = ssub.s32 %s23, %s35
      %s37 = ssub.s32 %s24, %s31
      %s38 = sor.u32 %s36, %s37
      %p39 = scmp.eq.s32.totalorder %s38, 0
      %s41 = sadd.s32 %s40, 1
      %s42 = scalar_select %p39, %s40, %s41
      %p45 = pneg %p39
      %p46 = scmp.eq.s32.totalorder %s16, 5
      %p47 = por %p45, %p46
      %p48 = scmp.ne.s32.totalorder %s40, %s43
      %p49 = scmp.eq.s32.totalorder %s16, 0
      %p50 = por %p48, %p49
      %p51 = scmp.ne.s32.totalorder %s40, %s43
      %p52 = scmp.eq.s32.totalorder %s21, 5
      %p53 = por %p51, %p52
      %p54 = scmp.ne.s32.totalorder %s43, %s44
      %p55 = scmp.eq.s32.totalorder %s21, 0
      %p56 = por %p54, %p55
      %p57 = scmp.ne.s32.totalorder %s43, %s44
      %p58 = scmp.eq.s32.totalorder %s22, 5
      %p59 = por %p57, %p58
      %p61 = scmp.ne.s32.totalorder %s44, %s60
      %p62 = scmp.eq.s32.totalorder %s22, 0
      %p63 = por %p61, %p62
      %s65 = sadd.s32 %s64, 1
      %p68 = scmp.eq.s32.totalorder %s16, 5
      %p69 = scmp.ne.s32.totalorder %s64, %s66
      %p70 = scmp.eq.s32.totalorder %s16, 0
      %p71 = por %p69, %p70
      %p72 = scmp.ne.s32.totalorder %s64, %s66
      %p73 = scmp.eq.s32.totalorder %s21, 5
      %p74 = por %p72, %p73
      %p75 = scmp.ne.s32.totalorder %s66, %s67
      %p76 = scmp.eq.s32.totalorder %s21, 0
      %p77 = por %p75, %p76
      %p78 = scmp.ne.s32.totalorder %s66, %s67
      %p79 = scmp.eq.s32.totalorder %s22, 5
      %p80 = por %p78, %p79
      %p82 = scmp.ne.s32.totalorder %s67, %s81
      %p83 = scmp.eq.s32.totalorder %s22, 0
      %p84 = por %p82, %p83
      %s86 = sadd.s32 %s85, 1
      %p89 = scmp.eq.s32.totalorder %s16, 5
      %p90 = scmp.ne.s32.totalorder %s85, %s87
      %p91 = scmp.eq.s32.totalorder %s16, 0
      %p92 = por %p90, %p91
      %p93 = scmp.ne.s32.totalorder %s85, %s87
      %p94 = scmp.eq.s32.totalorder %s21, 5
      %p95 = por %p93, %p94
      %p96 = scmp.ne.s32.totalorder %s87, %s88
      %p97 = scmp.eq.s32.totalorder %s21, 0
      %p98 = por %p96, %p97
      %p99 = scmp.ne.s32.totalorder %s87, %s88
      %p100 = scmp.eq.s32.totalorder %s22, 5
      %p101 = por %p99, %p100
      %p103 = scmp.ne.s32.totalorder %s88, %s102
      %p104 = scmp.eq.s32.totalorder %s22, 0
      %p105 = por %p103, %p104
      %s106 = ssub.s32 %s23, %s35
      %p107 = scmp.eq.s32.totalorder %s106, 0
      %s109 = sadd.s32 %s108, 1
      %s110 = scalar_select %p107, %s108, %s109
      %p113 = pneg %p107
      %p114 = scmp.eq.s32.totalorder %s16, 5
      %p115 = por %p113, %p114
      %p116 = scmp.ne.s32.totalorder %s108, %s111
      %p117 = scmp.eq.s32.totalorder %s16, 0
      %p118 = por %p116, %p117
      %p119 = scmp.ne.s32.totalorder %s108, %s111
      %p120 = scmp.eq.s32.totalorder %s21, 5
      %p121 = por %p119, %p120
      %p122 = scmp.ne.s32.totalorder %s111, %s112
      %p123 = scmp.eq.s32.totalorder %s21, 0
      %p124 = por %p122, %p123
      %p125 = scmp.ne.s32.totalorder %s111, %s112
      %p126 = scmp.eq.s32.totalorder %s22, 5
      %p127 = por %p125, %p126
      %p129 = scmp.ne.s32.totalorder %s112, %s128
      %p130 = scmp.eq.s32.totalorder %s22, 0
      %p131 = por %p129, %p130
      %p132 = scmp.le.s32.totalorder 1, %s16
      %p133 = scmp.lt.s32.totalorder %s16, 7
      %p134 = pnand %p132, %p133
      %p135 = pneg %p134
      // Predicated region
      $region9: #{tpu_custom_call.1} parent=5 // pred_check
        _
      $region10: #{tpu_custom_call.1} parent=5 // pred_check_branch
        %137 = sbr.rel (%p134) target = $region12
      $region11: #{tpu_custom_call.1} parent=5 // pred_region
        %s138 = ssub.s32 %s16, 1
        // Predicated region
        $region13: #{tpu_custom_call.1} parent=11 // pred_check
          %p139 = pneg %p77
        $region14: #{tpu_custom_call.1} parent=11 // pred_check_branch
          %141 = sbr.rel (%p139) target = $region16
        $region15: #{tpu_custom_call.1} parent=11 // pred_region
          %143 = vsyncadd [#allocation6], 0
          %s144 = sshll.u32 %s1, 4
          %s145 = int_to_ptr.hbm [resolvable:$true] %s144
          %s146 = sshll.u32 [#allocation5], 4
          %s147 = int_to_ptr.vmem [resolvable:$true] %s146
          %152 = dma.hbm_to_vmem [thread:$0]  %s145, 2048, %s147, [#allocation6], 64, 64, 4
        $region16: #{tpu_custom_call.1} parent=11 // pred_fallthru
          _
        // Predicated region
        $region17: #{tpu_custom_call.1} parent=11 // pred_check
          %p153 = pneg %p98
        $region18: #{tpu_custom_call.1} parent=11 // pred_check_branch
          %155 = sbr.rel (%p153) target = $region20
        $region19: #{tpu_custom_call.1} parent=11 // pred_region
          _
        $region20: #{tpu_custom_call.1} parent=11 // pred_fallthru
          _
      $region12: #{tpu_custom_call.1} parent=5 // pred_fallthru
        _
      %p156 = scmp.lt.s32.totalorder %s16, 6
      // Predicated region
      $region21: #{tpu_custom_call.1} parent=5 // pred_check
        %p157 = pneg %p156
      $region22: #{tpu_custom_call.1} parent=5 // pred_check_branch
        %159 = sbr.rel (%p157) target = $region24
      $region23: #{tpu_custom_call.1} parent=5 // pred_region
        // Predicated region
        $region25: #{tpu_custom_call.1} parent=23 // pred_check
          %p160 = pneg %p50
        $region26: #{tpu_custom_call.1} parent=23 // pred_check_branch
          %162 = sbr.rel (%p160) target = $region28
        $region27: #{tpu_custom_call.1} parent=23 // pred_region
          %s163 = sand.u32 %s40, 1
          %s164 = scalar_lea.sflag [#allocation3], %s163
          %s165 = sand.u32 %s40, 1
          %s166 = smul.addr %s165, 32
          %s167 = scalar_lea.vmem [#allocation2], %s166
          %s168 = smul.u32 8, %s23
          %170 = vsyncadd %s164, 0
          %s171 = smul.addr %s168, 2
          %s172 = sadd.s32 %s24, %s171
          %s173 = smul.addr %s172, 4
          %s174 = scalar_lea.hbm %s0, %s173
          %s175 = sshll.u32 %s174, 4
          %s176 = int_to_ptr.hbm [resolvable:$true] %s175
          %s177 = sshll.u32 %s167, 4
          %s178 = int_to_ptr.vmem [resolvable:$true] %s177
          %183 = dma.hbm_to_vmem [thread:$0]  %s176, 512, %s178, %s164, 128, 64, 4
        $region28: #{tpu_custom_call.1} parent=23 // pred_fallthru
          _
      $region24: #{tpu_custom_call.1} parent=5 // pred_fallthru
        _
      %p184 = scmp.le.s32.totalorder 1, %s16
      %p185 = scmp.lt.s32.totalorder %s16, 7
      %p186 = pnand %p184, %p185
      %p187 = pneg %p186
      // Predicated region
      $region29: #{tpu_custom_call.1} parent=5 // pred_check
        _
      $region30: #{tpu_custom_call.1} parent=5 // pred_check_branch
        %189 = sbr.rel (%p186) target = $region32
      $region31: #{tpu_custom_call.1} parent=5 // pred_region
        %s190 = ssub.s32 %s16, 1
        %s191 = sand.u32 %s43, 1
        %s192 = scalar_lea.sflag [#allocation3], %s191
        %s193 = sand.u32 %s43, 1
        %s194 = smul.addr %s193, 32
        %s195 = scalar_lea.vmem [#allocation2], %s194
        // Predicated region
        $region33: #{tpu_custom_call.1} parent=31 // pred_check
          %p196 = pneg %p56
        $region34: #{tpu_custom_call.1} parent=31 // pred_check_branch
          %198 = sbr.rel (%p196) target = $region36
        $region35: #{tpu_custom_call.1} parent=31 // pred_region
          %200 = dma.done %s192, 512
        $region36: #{tpu_custom_call.1} parent=31 // pred_fallthru
          _
        // Predicated region
        $region37: #{tpu_custom_call.1} parent=31 // pred_check
          %p201 = pneg %p77
        $region38: #{tpu_custom_call.1} parent=31 // pred_check_branch
          %203 = sbr.rel (%p201) target = $region40
        $region39: #{tpu_custom_call.1} parent=31 // pred_region
          %205 = dma.done [#allocation6], 2048
        $region40: #{tpu_custom_call.1} parent=31 // pred_fallthru
          _
        %s206 = sand.u32 %s43, 1
        %s207 = scalar_lea.sflag [#allocation3], %s206
        %s208 = sand.u32 %s43, 1
        %s209 = smul.addr %s208, 32
        %s210 = scalar_lea.vmem [#allocation2], %s209
        %p211 = pneg %p56
        %p212 = pneg %p53
        %p213 = pneg %p77
        %p214 = pneg %p74
        %p215 = pneg %p98
        %p216 = pneg %p95
        %p217 = pneg %p124
        %p218 = pneg %p121
        %s219 = sand.u32 %s111, 1
        %s220 = scalar_lea.sflag [#allocation4], %s219
        %s221 = sand.u32 %s111, 1
        %s222 = smul.addr %s221, 64
        %s223 = scalar_lea.vmem [#allocation7], %s222
        %s224 = smul.u32 8, %s25
        %s225 = smul.u32 8, %s25
        %p226 = scmp.eq.s32.totalorder %s26, 0
        // Predicated region
        $region41: #{tpu_custom_call.1} parent=31 // pred_check
          %p227 = pneg %p226
        $region42: #{tpu_custom_call.1} parent=31 // pred_check_branch
          %229 = sbr.rel (%p227) target = $region44
        $region43: #{tpu_custom_call.1} parent=31 // pred_region
          %230 = vst [vmem:[%s223] sm:$0xff] 0.0
          %231 = vst [vmem:[%s223 + $0x8] sm:$0xff] 0.0
          %232 = vst [vmem:[%s223 + $0x10] sm:$0xff] 0.0
          %233 = vst [vmem:[%s223 + $0x18] sm:$0xff] 0.0
          %234 = vst [vmem:[%s223 + $0x20] sm:$0xff] 0.0
          %235 = vst [vmem:[%s223 + $0x28] sm:$0xff] 0.0
          %236 = vst [vmem:[%s223 + $0x30] sm:$0xff] 0.0
          %237 = vst [vmem:[%s223 + $0x38] sm:$0xff] 0.0
        $region44: #{tpu_custom_call.1} parent=31 // pred_fallthru
          _
        %s238 = smul.u32 %s26, 128
        %s239 = sshra.s32 %s238, 3
        %s240 = sand.u32 %s238, 7
        %s241 = smul.addr %s239, 4
        %s242 = scalar_lea.vmem [#allocation5], %s241
        %v243 = vld [vmem:[%s242] sm:$0xf]
        %v244 = vld [vmem:[%s242 + $0x4] sm:$0xf]
        %v245 = vld [vmem:[%s242 + $0x8] sm:$0xf]
        %v246 = vld [vmem:[%s242 + $0xc] sm:$0xf]
        %v247 = vld [vmem:[%s242 + $0x10] sm:$0xf]
        %v248 = vld [vmem:[%s242 + $0x14] sm:$0xf]
        %v249 = vld [vmem:[%s242 + $0x18] sm:$0xf]
        %v250 = vld [vmem:[%s242 + $0x1c] sm:$0xf]
        %v251 = vld [vmem:[%s242 + $0x20] sm:$0xf]
        %v252 = vld [vmem:[%s242 + $0x24] sm:$0xf]
        %v253 = vld [vmem:[%s242 + $0x28] sm:$0xf]
        %v254 = vld [vmem:[%s242 + $0x2c] sm:$0xf]
        %v255 = vld [vmem:[%s242 + $0x30] sm:$0xf]
        %v256 = vld [vmem:[%s242 + $0x34] sm:$0xf]
        %v257 = vld [vmem:[%s242 + $0x38] sm:$0xf]
        %v258 = vld [vmem:[%s242 + $0x3c] sm:$0xf]
        %v259 = vld [vmem:[%s223] sm:$0xff]
        %v260 = vld [vmem:[%s223 + $0x8] sm:$0xff]
        %v261 = vld [vmem:[%s223 + $0x10] sm:$0xff]
        %v262 = vld [vmem:[%s223 + $0x18] sm:$0xff]
        %v263 = vld [vmem:[%s223 + $0x20] sm:$0xff]
        %v264 = vld [vmem:[%s223 + $0x28] sm:$0xff]
        %v265 = vld [vmem:[%s223 + $0x30] sm:$0xff]
        %v266 = vld [vmem:[%s223 + $0x38] sm:$0xff]
        %v267 = vld [vmem:[%s195] sm:$0xf]
        %v268 = vld [vmem:[%s195 + $0x4] sm:$0xf]
        %v269 = vld [vmem:[%s195 + $0x8] sm:$0xf]
        %v270 = vld [vmem:[%s195 + $0xc] sm:$0xf]
        %v271 = vld [vmem:[%s195 + $0x10] sm:$0xf]
        %v272 = vld [vmem:[%s195 + $0x14] sm:$0xf]
        %v273 = vld [vmem:[%s195 + $0x18] sm:$0xf]
        %v274 = vld [vmem:[%s195 + $0x1c] sm:$0xf]
        %v283 = vunpack.c.l.b16 %v267
        %v284 = vunpack.c.l.b16 %v268
        %v285 = vunpack.c.l.b16 %v269
        %v286 = vunpack.c.l.b16 %v270
        %v287 = vunpack.c.l.b16 %v271
        %v288 = vunpack.c.l.b16 %v272
        %v289 = vunpack.c.l.b16 %v273
        %v290 = vunpack.c.l.b16 %v274
        %v291 = vpack.c.b16 %v284, %v283
        %v292 = vpack.c.b16 %v286, %v285
        %v293 = vpack.c.b16 %v288, %v287
        %v294 = vpack.c.b16 %v290, %v289
        %v315 = vunpack.c.l.b16 %v243
        %v316 = vunpack.c.l.b16 %v244
        %v317 = vunpack.c.l.b16 %v245
        %v318 = vunpack.c.l.b16 %v246
        %v319 = vunpack.c.l.b16 %v247
        %v320 = vunpack.c.l.b16 %v248
        %v321 = vunpack.c.l.b16 %v249
        %v322 = vunpack.c.l.b16 %v250
        %v323 = vunpack.c.l.b16 %v251
        %v324 = vunpack.c.l.b16 %v252
        %v325 = vunpack.c.l.b16 %v253
        %v326 = vunpack.c.l.b16 %v254
        %v327 = vunpack.c.l.b16 %v255
        %v328 = vunpack.c.l.b16 %v256
        %v329 = vunpack.c.l.b16 %v257
        %v330 = vunpack.c.l.b16 %v258
        %v331 = vpack.c.b16 %v316, %v315
        %v332 = vpack.c.b16 %v318, %v317
        %v333 = vpack.c.b16 %v320, %v319
        %v334 = vpack.c.b16 %v322, %v321
        %v335 = vpack.c.b16 %v324, %v323
        %v336 = vpack.c.b16 %v326, %v325
        %v337 = vpack.c.b16 %v328, %v327
        %v338 = vpack.c.b16 %v330, %v329
        %347 = vmatpush.bf16.msra.mxu0 %v338
        %348 = vmatpush.bf16.msra.mxu0 %v337
        %349 = vmatpush.bf16.msra.mxu0 %v336
        %350 = vmatpush.bf16.msra.mxu0 %v335
        %351 = vmatpush.bf16.msra.mxu0 %v334
        %352 = vmatpush.bf16.msra.mxu0 %v333
        %353 = vmatpush.bf16.msra.mxu0 %v332
        %354 = vmatpush.bf16.msra.mxu0 %v331
        %355 = vmatmul.bf16.gmra.mxu0 %v291
        %v356 = vpop.f32.mrf.mxu0
        %v357 = vadd.f32 0.0, %v356
        %v358 = vpop.f32.mrf.mxu0
        %v359 = vadd.f32 0.0, %v358
        %360 = vmatmul.bf16.gmra.mxu0 %v292
        %v361 = vpop.f32.mrf.mxu0
        %v362 = vadd.f32 0.0, %v361
        %v363 = vpop.f32.mrf.mxu0
        %v364 = vadd.f32 0.0, %v363
        %365 = vmatmul.bf16.gmra.mxu0 %v293
        %v366 = vpop.f32.mrf.mxu0
        %v367 = vadd.f32 0.0, %v366
        %v368 = vpop.f32.mrf.mxu0
        %v369 = vadd.f32 0.0, %v368
        %370 = vmatmul.bf16.gmra.mxu0 %v294
        %v371 = vpop.f32.mrf.mxu0
        %v372 = vadd.f32 0.0, %v371
        %v373 = vpop.f32.mrf.mxu0
        %v374 = vadd.f32 0.0, %v373
        %375 = vdwg.mxu0
        %v376 = vadd.f32 %v259, %v357
        %v377 = vadd.f32 %v260, %v359
        %v378 = vadd.f32 %v261, %v362
        %v379 = vadd.f32 %v262, %v364
        %v380 = vadd.f32 %v263, %v367
        %v381 = vadd.f32 %v264, %v369
        %v382 = vadd.f32 %v265, %v372
        %v383 = vadd.f32 %v266, %v374
        %384 = vst [vmem:[%s223] sm:$0xff] %v376
        %385 = vst [vmem:[%s223 + $0x8] sm:$0xff] %v377
        %386 = vst [vmem:[%s223 + $0x10] sm:$0xff] %v378
        %387 = vst [vmem:[%s223 + $0x18] sm:$0xff] %v379
        %388 = vst [vmem:[%s223 + $0x20] sm:$0xff] %v380
        %389 = vst [vmem:[%s223 + $0x28] sm:$0xff] %v381
        %390 = vst [vmem:[%s223 + $0x30] sm:$0xff] %v382
        %391 = vst [vmem:[%s223 + $0x38] sm:$0xff] %v383
        %p392 = scmp.eq.s32.totalorder %s26, 1
        // Predicated region
        $region45: #{tpu_custom_call.1} parent=31 // pred_check
          %p393 = pneg %p392
        $region46: #{tpu_custom_call.1} parent=31 // pred_check_branch
          %395 = sbr.rel (%p393) target = $region48
        $region47: #{tpu_custom_call.1} parent=31 // pred_region
          %v396 = vld [vmem:[%s223] sm:$0xff]
          %v397 = vld [vmem:[%s223 + $0x8] sm:$0xff]
          %v398 = vld [vmem:[%s223 + $0x10] sm:$0xff]
          %v399 = vld [vmem:[%s223 + $0x18] sm:$0xff]
          %v400 = vld [vmem:[%s223 + $0x20] sm:$0xff]
          %v401 = vld [vmem:[%s223 + $0x28] sm:$0xff]
          %v402 = vld [vmem:[%s223 + $0x30] sm:$0xff]
          %v403 = vld [vmem:[%s223 + $0x38] sm:$0xff]
          %v404 = vld [vmem:[%s2] sm:$0x1]
          %v406 = vperm.slane %v404, 0
          %v408 = vadd.f32 %v396, %v406
          %v409 = vadd.f32 %v397, %v406
          %v410 = vadd.f32 %v398, %v406
          %v411 = vadd.f32 %v399, %v406
          %v412 = vadd.f32 %v400, %v406
          %v413 = vadd.f32 %v401, %v406
          %v414 = vadd.f32 %v402, %v406
          %v415 = vadd.f32 %v403, %v406
          %vm416 = vcmp.gt.f32.partialorder %v408, 0.0
          %vm417 = vcmp.gt.f32.partialorder %v409, 0.0
          %vm418 = vcmp.gt.f32.partialorder %v410, 0.0
          %vm419 = vcmp.gt.f32.partialorder %v411, 0.0
          %vm420 = vcmp.gt.f32.partialorder %v412, 0.0
          %vm421 = vcmp.gt.f32.partialorder %v413, 0.0
          %vm422 = vcmp.gt.f32.partialorder %v414, 0.0
          %vm423 = vcmp.gt.f32.partialorder %v415, 0.0
          %v424 = vmul.f32 %v408, 0.25
          %v425 = vmul.f32 %v409, 0.25
          %v426 = vmul.f32 %v410, 0.25
          %v427 = vmul.f32 %v411, 0.25
          %v428 = vmul.f32 %v412, 0.25
          %v429 = vmul.f32 %v413, 0.25
          %v430 = vmul.f32 %v414, 0.25
          %v431 = vmul.f32 %v415, 0.25
          %v432 = vsel %vm416, %v408, %v424
          %v433 = vsel %vm417, %v409, %v425
          %v434 = vsel %vm418, %v410, %v426
          %v435 = vsel %vm419, %v411, %v427
          %v436 = vsel %vm420, %v412, %v428
          %v437 = vsel %vm421, %v413, %v429
          %v438 = vsel %vm422, %v414, %v430
          %v439 = vsel %vm423, %v415, %v431
          %440 = vst [vmem:[%s223] sm:$0xff] %v432
          %441 = vst [vmem:[%s223 + $0x8] sm:$0xff] %v433
          %442 = vst [vmem:[%s223 + $0x10] sm:$0xff] %v434
          %443 = vst [vmem:[%s223 + $0x18] sm:$0xff] %v435
          %444 = vst [vmem:[%s223 + $0x20] sm:$0xff] %v436
          %445 = vst [vmem:[%s223 + $0x28] sm:$0xff] %v437
          %446 = vst [vmem:[%s223 + $0x30] sm:$0xff] %v438
          %447 = vst [vmem:[%s223 + $0x38] sm:$0xff] %v439
        $region48: #{tpu_custom_call.1} parent=31 // pred_fallthru
          _
        %s448 = sand.u32 %s111, 1
        %s449 = scalar_lea.sflag [#allocation4], %s448
        %s450 = sand.u32 %s111, 1
        %s451 = smul.addr %s450, 64
        %s452 = scalar_lea.vmem [#allocation7], %s451
        // Predicated region
        $region49: #{tpu_custom_call.1} parent=31 // pred_check
          %p453 = pneg %p121
        $region50: #{tpu_custom_call.1} parent=31 // pred_check_branch
          %455 = sbr.rel (%p453) target = $region52
        $region51: #{tpu_custom_call.1} parent=31 // pred_region
          %s456 = smul.u32 8, %s25
          %458 = vsyncadd %s449, 0
          %s459 = smul.addr %s456, 8
          %s460 = scalar_lea.hbm %s3, %s459
          %s461 = sshll.u32 %s452, 4
          %s462 = int_to_ptr.vmem [resolvable:$true] %s461
          %s463 = sshll.u32 %s460, 4
          %s464 = int_to_ptr.hbm [resolvable:$true] %s463
          %469 = dma.vmem_to_hbm [thread:$0]  %s462, 1024, %s464, %s449, 128, 128, 8
        $region52: #{tpu_custom_call.1} parent=31 // pred_fallthru
          _
      $region32: #{tpu_custom_call.1} parent=5 // pred_fallthru
        _
      %p470 = scmp.le.s32.totalorder 2, %s16
      // Predicated region
      $region53: #{tpu_custom_call.1} parent=5 // pred_check
        %p471 = pneg %p470
      $region54: #{tpu_custom_call.1} parent=5 // pred_check_branch
        %473 = sbr.rel (%p471) target = $region56
      $region55: #{tpu_custom_call.1} parent=5 // pred_region
        %s474 = ssub.s32 %s16, 2
        // Predicated region
        $region57: #{tpu_custom_call.1} parent=55 // pred_check
          %p475 = pneg %p127
        $region58: #{tpu_custom_call.1} parent=55 // pred_check_branch
          %477 = sbr.rel (%p475) target = $region60
        $region59: #{tpu_custom_call.1} parent=55 // pred_region
          %s478 = sand.u32 %s112, 1
          %s479 = scalar_lea.sflag [#allocation4], %s478
          %s480 = sand.u32 %s112, 1
          %s481 = smul.addr %s480, 64
          %s482 = scalar_lea.vmem [#allocation7], %s481
          %484 = dma.done %s479, 1024
        $region60: #{tpu_custom_call.1} parent=55 // pred_fallthru
          _
      $region56: #{tpu_custom_call.1} parent=5 // pred_fallthru
        _
    $region6: #{tpu_custom_call.1} parent=1 // loop_footer
      %s20 = sadd.s32 1, %s16
    $region7: #{tpu_custom_call.1} parent=1 // loop_footer_branch
      %15 = sbr.rel target = $region3
    $region8: #{tpu_custom_call.1} parent=1 // loop_exit
      _
    %485 = vsyncpa [#allocation3], 1
    %s486 = scalar_lea.sflag [#allocation3], 1
    %487 = vsyncpa %s486, 1
    %488 = vsyncpa [#allocation6], 1
    %489 = vsyncpa [#allocation4], 1
    %s490 = scalar_lea.sflag [#allocation4], 1
    %491 = vsyncpa %s490, 1

</llo_original>
